<compile_context>
chip_gen: v5e
topology: v5e:2x2
jax: 0.10.0
libtpu: 0.0.40
codegen_flags: <defaults>
</compile_context>

<pallas_src>
import functools

import jax
import jax.numpy as jnp
from jax.experimental import pallas as pl
from jax.experimental.pallas import tpu as pltpu


def _sse_partial_kernel(pred_ref, tgt_ref, out_ref, acc_ref, *,
                        rows, tile_rows, tiles_per_part, trace_mask):
    """Per-part sum of squared error.

    grid = (num_parts, tiles_per_part); axis 0 is parallel (megacore), axis 1
    is the sequential reduction sweep. acc_ref is a tile-shaped f32 VMEM
    accumulator updated with pure VPU adds; the single cross-lane/sublane
    (XLU) reduction happens only on the last sweep step of each part.
    """
    p = pl.program_id(0)
    i = pl.program_id(1)

    @pl.when(i == 0)
    def _init():
        acc_ref[...] = jnp.zeros_like(acc_ref)

    d = pred_ref[...].astype(jnp.float32) - tgt_ref[...].astype(jnp.float32)
    sq = d * d

    if trace_mask:
        g = p * tiles_per_part + i          # unclamped global tile index
        tile_end = (g + 1) * tile_rows

        @pl.when(tile_end <= rows)          # interior tile: pure VPU add
        def _full():
            acc_ref[...] = acc_ref[...] + sq

        @pl.when(tile_end > rows)           # ragged last tile / phantom tile
        def _edge():
            row_ids = g * tile_rows + jax.lax.broadcasted_iota(
                jnp.int32, sq.shape, 0)
            acc_ref[...] = acc_ref[...] + jnp.where(row_ids < rows, sq, 0.0)
    else:
        acc_ref[...] = acc_ref[...] + sq    # hidden under the input DMA

    @pl.when(i == pl.num_programs(1) - 1)
    def _finalize():
        col = jnp.sum(acc_ref[...], axis=0, keepdims=True)   # (1, lanes)
        out_ref[...] = jnp.sum(col, axis=1, keepdims=True)   # (1, 1)


def _sublane_multiple(dtype):
    """Minimum sublane multiple for a dtype (8 f32, 16 bf16, 32 int8/fp8)."""
    itemsize = jnp.dtype(dtype).itemsize
    return 8 * max(1, 4 // itemsize)


@functools.partial(jax.jit, static_argnames=("tile_rows_max", "lanes"))
def mse_loss(pred, target, *, tile_rows_max=4096, lanes=128):
    """Mean-squared-error loss computed in a Pallas TPU kernel.

    pred, target: arrays of identical shape (e.g. NCHW), any float dtype.
    Returns a scalar f32.
    """
    assert pred.shape == target.shape
    n_elem = pred.size

    p_flat = pred.reshape(-1)
    t_flat = target.reshape(-1)

    tail = n_elem % lanes          # <=127 trailing elements
    bulk = n_elem - tail

    tail_sse = None
    if tail:
        dt = (jax.lax.slice(p_flat, (bulk,), (n_elem,)).astype(jnp.float32)
              - jax.lax.slice(t_flat, (bulk,), (n_elem,)).astype(jnp.float32))
        tail_sse = jnp.sum(dt * dt)

    if bulk == 0:
        return tail_sse * (1.0 / n_elem)

    if tail:
        # TODO(synk): this bulk slice may still materialize a copy for sizes
        # not divisible by 128; the common divisible case below is zero-copy.
        p_bulk = jax.lax.slice(p_flat, (0,), (bulk,))
        t_bulk = jax.lax.slice(t_flat, (0,), (bulk,))
    else:
        p_bulk, t_bulk = p_flat, t_flat

    rows = bulk // lanes
    p2 = p_bulk.reshape(rows, lanes)
    t2 = t_bulk.reshape(rows, lanes)

    # Tile selection: as large as possible up to tile_rows_max rows; blocks
    # smaller than the full extent are rounded to the dtype's sublane tile.
    sublane = max(_sublane_multiple(pred.dtype), _sublane_multiple(target.dtype))
    tile_rows = min(tile_rows_max, rows)
    if tile_rows < rows:
        tile_rows = max(sublane, (tile_rows // sublane) * sublane)
        tile_rows = min(tile_rows, rows)

    total_tiles = -(-rows // tile_rows)

    # Unconditional 2-way split (one partial per TensorCore on v7x). Odd tile
    # counts produce one phantom tile; its block index is clamped below and its
    # contribution zeroed by the in-kernel row mask. Serial no-op on v5e/v6e.
    num_parts = 2 if total_tiles >= 2 else 1
    tiles_per_part = -(-total_tiles // num_parts)
    trace_mask = (rows % tile_rows != 0) or (num_parts * tiles_per_part != total_tiles)

    kernel = functools.partial(
        _sse_partial_kernel,
        rows=rows,
        tile_rows=tile_rows,
        tiles_per_part=tiles_per_part,
        trace_mask=trace_mask,
    )

    last_block = total_tiles - 1

    def in_index_map(p, i):
        # Clamp the phantom tile (odd total_tiles) onto the last real tile.
        return (jnp.minimum(p * tiles_per_part + i, last_block), 0)

    in_specs = [pl.BlockSpec((tile_rows, lanes), in_index_map),
                pl.BlockSpec((tile_rows, lanes), in_index_map)]

    in_itemsize = (jnp.dtype(pred.dtype).itemsize
                   + jnp.dtype(target.dtype).itemsize)
    in_tile_bytes = tile_rows * lanes * in_itemsize
    acc_bytes = tile_rows * lanes * 4
    # Double-buffered inputs + tile-shaped accumulator + headroom; always well
    # below v7x's 64 MiB physical VMEM and v5e/v6e's 128 MiB.
    vmem_limit_bytes = max(2 * in_tile_bytes + acc_bytes + (4 << 20), 32 << 20)

    cost = pl.CostEstimate(
        flops=3 * bulk,                       # sub, mul, add per element
        transcendentals=0,
        bytes_accessed=bulk * in_itemsize + num_parts * 4,
    )

    partials = pl.pallas_call(
        kernel,
        out_shape=jax.ShapeDtypeStruct((num_parts, 1, 1), jnp.float32),
        grid_spec=pltpu.PrefetchScalarGridSpec(
            num_scalar_prefetch=0,
            grid=(num_parts, tiles_per_part),
            in_specs=in_specs,
            out_specs=pl.BlockSpec((None, 1, 1), lambda p, i: (p, 0, 0)),
            scratch_shapes=[pltpu.VMEM((tile_rows, lanes), jnp.float32)],
        ),
        compiler_params=pltpu.CompilerParams(
            dimension_semantics=("parallel", "arbitrary"),
            vmem_limit_bytes=vmem_limit_bytes,
        ),
        cost_estimate=cost,
    )(p2, t2)

    total = jnp.sum(partials)
    if tail:
        total = total + tail_sse
    return total * (1.0 / n_elem)


if __name__ == "__main__":
    key = jax.random.PRNGKey(0)
    ks = jax.random.split(key, 12)

    def ref_mse(p, t):
        return jnp.mean((p.astype(jnp.float32) - t.astype(jnp.float32)) ** 2)

    # 1) Primary small NCHW case (loss over conv activations).
    pred = jax.random.normal(ks[0], (2, 4, 16, 16), dtype=jnp.float32)
    target = jax.random.normal(ks[1], (2, 4, 16, 16), dtype=jnp.float32)
    loss = mse_loss(pred, target)
    jax.block_until_ready(loss)
    assert jnp.allclose(loss, ref_mse(pred, target), rtol=1e-5, atol=1e-5)

    # 2) Two-part split + ragged last tile (rows=12, tile=8).
    p = jax.random.normal(ks[2], (2, 4, 12, 16), dtype=jnp.float32)
    t = jax.random.normal(ks[3], (2, 4, 12, 16), dtype=jnp.float32)
    assert jnp.allclose(mse_loss(p, t, tile_rows_max=8), ref_mse(p, t),
                        rtol=1e-5, atol=1e-5)

    # 3) Odd tile count -> phantom tile on the second part (rows=24, tile=8).
    p = jax.random.normal(ks[4], (3, 4, 16, 16), dtype=jnp.float32)
    t = jax.random.normal(ks[5], (3, 4, 16, 16), dtype=jnp.float32)
    assert jnp.allclose(mse_loss(p, t, tile_rows_max=8), ref_mse(p, t),
                        rtol=1e-5, atol=1e-5)

    # 4) bf16 inputs: dtype-aware 16-row sublane rounding (rows=32, tile=16).
    p = jax.random.normal(ks[6], (2, 4, 32, 16), dtype=jnp.bfloat16)
    t = jax.random.normal(ks[7], (2, 4, 32, 16), dtype=jnp.bfloat16)
    assert jnp.allclose(mse_loss(p, t, tile_rows_max=8), ref_mse(p, t),
                        rtol=1e-4, atol=1e-4)

    # 5) Lane tail (n_elem % 128 != 0): host-side tail sum path, no full pad.
    p = jax.random.normal(ks[8], (2, 3, 7, 5), dtype=jnp.float32)
    t = jax.random.normal(ks[9], (2, 3, 7, 5), dtype=jnp.float32)
    assert jnp.allclose(mse_loss(p, t), ref_mse(p, t), rtol=1e-5, atol=1e-5)

    # 6) Multi-step unmasked sweep on both parts (rows=512, tile=128).
    p = jax.random.normal(ks[10], (2, 4, 64, 128), dtype=jnp.float32)
    t = jax.random.normal(ks[11], (2, 4, 64, 128), dtype=jnp.float32)
    assert jnp.allclose(mse_loss(p, t, tile_rows_max=128), ref_mse(p, t),
                        rtol=1e-5, atol=1e-5)

    print("KERNEL_OK")
</pallas_src>

<mosaic_0001>
module attributes {stable_mosaic.version = 11 : i64} {
  func.func @_sse_partial_kernel(%arg0: i32, %arg1: i32, %arg2: memref<16x128xf32, #tpu.memory_space<vmem>>, %arg3: memref<16x128xf32, #tpu.memory_space<vmem>>, %arg4: memref<1x1x1xf32, #tpu.memory_space<vmem>>, %arg5: memref<16x128xf32, #tpu.memory_space<vmem>>) attributes {dimension_semantics = [#tpu.dimension_semantics<parallel>, #tpu.dimension_semantics<arbitrary>], iteration_bounds = array<i64: 1, 1>, scalar_prefetch = 0 : i64, scratch_operands = 1 : i64, tpu.core_type = #tpu.core_type<tc>, window_params = [{transform_indices = @transform_0, window_bounds = array<i64: 16, 128>}, {transform_indices = @transform_1, window_bounds = array<i64: 16, 128>}, {transform_indices = @transform_2, window_bounds = array<i64: 1, 1, 1>}]} {
    %c0_i32 = arith.constant 0 : i32
    %0 = arith.cmpi eq, %arg1, %c0_i32 : i32
    %1 = arith.extui %0 : i1 to i32
    %c0_i32_0 = arith.constant 0 : i32
    %2 = arith.cmpi ne, %1, %c0_i32_0 : i32
    scf.if %2 {
      %cst = arith.constant 0.000000e+00 : f32
      %13 = vector.broadcast %cst : f32 to vector<16x128xf32>
      %c0_10 = arith.constant 0 : index
      %c0_11 = arith.constant 0 : index
      %14 = vector.load %arg5[%c0_10, %c0_11] : memref<16x128xf32, #tpu.memory_space<vmem>>, vector<16x128xf32>
      tpu.vector_store %arg5[%c0_10, %c0_11], %13 {strides = array<i32>} : memref<16x128xf32, #tpu.memory_space<vmem>>, vector<16x128xf32>,
    } else {
    }
    %c0 = arith.constant 0 : index
    %c0_1 = arith.constant 0 : index
    %3 = vector.load %arg2[%c0, %c0_1] : memref<16x128xf32, #tpu.memory_space<vmem>>, vector<16x128xf32>
    %c0_2 = arith.constant 0 : index
    %c0_3 = arith.constant 0 : index
    %4 = vector.load %arg3[%c0_2, %c0_3] : memref<16x128xf32, #tpu.memory_space<vmem>>, vector<16x128xf32>
    %5 = arith.subf %3, %4 : vector<16x128xf32>
    %6 = arith.mulf %5, %5 : vector<16x128xf32>
    %c0_4 = arith.constant 0 : index
    %c0_5 = arith.constant 0 : index
    %7 = vector.load %arg5[%c0_4, %c0_5] : memref<16x128xf32, #tpu.memory_space<vmem>>, vector<16x128xf32>
    %8 = arith.addf %7, %6 : vector<16x128xf32>
    %c0_6 = arith.constant 0 : index
    %c0_7 = arith.constant 0 : index
    %9 = vector.load %arg5[%c0_6, %c0_7] : memref<16x128xf32, #tpu.memory_space<vmem>>, vector<16x128xf32>
    tpu.vector_store %arg5[%c0_6, %c0_7], %8 {strides = array<i32>} : memref<16x128xf32, #tpu.memory_space<vmem>>, vector<16x128xf32>,
    %c0_i32_8 = arith.constant 0 : i32
    %10 = arith.cmpi eq, %arg1, %c0_i32_8 : i32
    %11 = arith.extui %10 : i1 to i32
    %c0_i32_9 = arith.constant 0 : i32
    %12 = arith.cmpi ne, %11, %c0_i32_9 : i32
    scf.if %12 {
      %c0_10 = arith.constant 0 : index
      %c0_11 = arith.constant 0 : index
      %13 = vector.load %arg5[%c0_10, %c0_11] : memref<16x128xf32, #tpu.memory_space<vmem>>, vector<16x128xf32>
      %cst = arith.constant dense<0.000000e+00> : vector<128xf32>
      %14 = vector.multi_reduction <add>, %13, %cst [0] : vector<16x128xf32> to vector<128xf32>
      %15 = vector.shape_cast %14 : vector<128xf32> to vector<1x128xf32>
      %cst_12 = arith.constant dense<0.000000e+00> : vector<1xf32>
      %16 = vector.multi_reduction <add>, %15, %cst_12 [1] : vector<1x128xf32> to vector<1xf32>
      %17 = vector.shape_cast %16 : vector<1xf32> to vector<1x1xf32>
      %c0_13 = arith.constant 0 : index
      %c0_14 = arith.constant 0 : index
      %c0_15 = arith.constant 0 : index
      %18 = vector.load %arg4[%c0_13, %c0_14, %c0_15] : memref<1x1x1xf32, #tpu.memory_space<vmem>>, vector<1x1x1xf32>
      %19 = vector.shape_cast %18 : vector<1x1x1xf32> to vector<1x1xf32>
      %20 = vector.shape_cast %17 : vector<1x1xf32> to vector<1x1x1xf32>
      tpu.vector_store %arg4[%c0_13, %c0_14, %c0_15], %20 {strides = array<i32>} : memref<1x1x1xf32, #tpu.memory_space<vmem>>, vector<1x1x1xf32>,
    } else {
    }
    return
  }
  func.func @transform_0(%arg0: i32, %arg1: i32) -> (i32, i32) {
    %c1_i32 = arith.constant 1 : i32
    %0 = arith.muli %arg0, %c1_i32 : i32
    %1 = arith.addi %0, %arg1 : i32
    %c0_i32 = arith.constant 0 : i32
    %2 = arith.minsi %1, %c0_i32 : i32
    %c0_i32_0 = arith.constant 0 : i32
    %c0_i32_1 = arith.constant 0 : i32
    return %2, %c0_i32_0 : i32, i32
  }
  func.func @transform_1(%arg0: i32, %arg1: i32) -> (i32, i32) {
    %c1_i32 = arith.constant 1 : i32
    %0 = arith.muli %arg0, %c1_i32 : i32
    %1 = arith.addi %0, %arg1 : i32
    %c0_i32 = arith.constant 0 : i32
    %2 = arith.minsi %1, %c0_i32 : i32
    %c0_i32_0 = arith.constant 0 : i32
    %c0_i32_1 = arith.constant 0 : i32
    return %2, %c0_i32_0 : i32, i32
  }
  func.func @transform_2(%arg0: i32, %arg1: i32) -> (i32, i32, i32) {
    %c0_i32 = arith.constant 0 : i32
    %c0_i32_0 = arith.constant 0 : i32
    %c0_i32_1 = arith.constant 0 : i32
    return %arg0, %c0_i32, %c0_i32_0 : i32, i32, i32
  }
}

</mosaic_0001>

<llo_original>
// kernel: mse_loss.1
$region0: #{mse_loss.1}
  #allocation0 [shape = 'u32[]', space=smem, size = 0x4, offset = 0x4, fixed_abs, tag = 'smem constant byte address 0x4 - core index']
  #allocation1 [shape = 'u32[72,128]{1,0:T(1,128)}', space=vmem, size = 0x9000, scoped, tag = 'internal scratch']
  #allocation2 [shape = 'f32[16,128]{1,0:T(8,128)}', space=vmem, size = 0x2000, scoped, tag = 'scratch operand']
  %s0 = inlined_call_operand.vmem [shape: f32[16,128], index: 0, kind: input, shape index: {}]
  %s1 = inlined_call_operand.vmem [shape: f32[16,128], index: 1, kind: input, shape index: {}]
  %s2 = inlined_call_operand.hbm [shape: f32[1,1,1], index: 2, kind: output, shape index: {}]
  %s3 = sld [smem:[#allocation0]]
  $region26: #{mse_loss.1} parent=0
    _
  %s5 = ssub.s32 1, %s3
  %s6 = scalar_select 0, %s5, %s3
  $region1: #{mse_loss.1} parent=0
    #allocation3 [shape = 'u8[512]{0}', space=vmem, size = 0x400, scoped, tag = 'output window, operand 0, single buffered']
    #allocation4 [shape = 's32[1]{0}', space=sflag, size = 0x4, scoped, tag = 'scoped memory for mse_loss.1']
    %7 = vsyncpa [#allocation4], 0
    // Predicated region
    $region2: #{mse_loss.1} parent=1 // pred_check
      _
    $region3: #{mse_loss.1} parent=1 // pred_check_branch
      %9 = sbr.rel (0) target = $region5
    $region4: #{mse_loss.1} parent=1 // pred_region
      %s10 = sadd.s32 0, 0
      %p11 = scmp.lt.s32.totalorder %s10, 0
      %s12 = scalar_select %p11, %s10, 0
      %s13 = smul.u32 2, %s12
      %p14 = scmp.lt.s32.totalorder %s13, 1
      %s15 = scalar_select %p14, %s13, 1
      %s16 = smul.addr %s15, 8
      %s17 = scalar_lea.vmem %s0, %s16
      %s18 = sadd.s32 0, 0
      %p19 = scmp.lt.s32.totalorder %s18, 0
      %s20 = scalar_select %p19, %s18, 0
      %s21 = smul.u32 2, %s20
    $region5: #{mse_loss.1} parent=1 // pred_fallthru
      _
    // Predicated region
    $region6: #{mse_loss.1} parent=1 // pred_check
      _
    $region7: #{mse_loss.1} parent=1 // pred_check_branch
      %23 = sbr.rel (0) target = $region9
    $region8: #{mse_loss.1} parent=1 // pred_region
      %s24 = sadd.s32 0, 0
      %p25 = scmp.lt.s32.totalorder %s24, 0
      %s26 = scalar_select %p25, %s24, 0
      %s27 = smul.u32 2, %s26
      %p28 = scmp.lt.s32.totalorder %s27, 1
      %s29 = scalar_select %p28, %s27, 1
      %s30 = smul.addr %s29, 8
      %s31 = scalar_lea.vmem %s1, %s30
      %s32 = sadd.s32 0, 0
      %p33 = scmp.lt.s32.totalorder %s32, 0
      %s34 = scalar_select %p33, %s32, 0
      %s35 = smul.u32 2, %s34
    $region9: #{mse_loss.1} parent=1 // pred_fallthru
      _
    %s36 = sadd.s32 0, 0
    %p37 = scmp.lt.s32.totalorder %s36, 0
    %s38 = scalar_select %p37, %s36, 0
    %s39 = smul.u32 2, %s38
    %p40 = scmp.lt.s32.totalorder %s39, 1
    %s41 = scalar_select %p40, %s39, 1
    %s42 = smul.addr %s41, 8
    %s43 = scalar_lea.vmem %s0, %s42
    %s44 = sadd.s32 0, 0
    %p45 = scmp.lt.s32.totalorder %s44, 0
    %s46 = scalar_select %p45, %s44, 0
    %s47 = smul.u32 2, %s46
    %p48 = scmp.lt.s32.totalorder %s47, 1
    %s49 = scalar_select %p48, %s47, 1
    %s50 = smul.addr %s49, 8
    %s51 = scalar_lea.vmem %s1, %s50
    %s52 = sadd.s32 0, 0
    %p53 = scmp.lt.s32.totalorder %s52, 0
    %s54 = scalar_select %p53, %s52, 0
    %s55 = smul.u32 2, %s54
    %p56 = scmp.lt.s32.totalorder %s55, 1
    %s57 = scalar_select %p56, %s55, 1
    %s58 = smul.addr %s57, 8
    %s59 = scalar_lea.vmem %s0, %s58
    %s60 = sadd.s32 0, 0
    %p61 = scmp.lt.s32.totalorder %s60, 0
    %s62 = scalar_select %p61, %s60, 0
    %s63 = smul.u32 2, %s62
    %s64 = sadd.s32 0, 0
    %p65 = scmp.lt.s32.totalorder %s64, 0
    %s66 = scalar_select %p65, %s64, 0
    %s67 = smul.u32 2, %s66
    %p68 = scmp.lt.s32.totalorder %s67, 1
    %s69 = scalar_select %p68, %s67, 1
    %s70 = smul.addr %s69, 8
    %s71 = scalar_lea.vmem %s1, %s70
    %s72 = sadd.s32 0, 0
    %p73 = scmp.lt.s32.totalorder %s72, 0
    %s74 = scalar_select %p73, %s72, 0
    %s75 = smul.u32 2, %s74
    %p76 = scmp.eq.s32.totalorder 0, 0
    // Predicated region
    $region10: #{mse_loss.1} parent=1 // pred_check
      %p77 = pneg %p76
    $region11: #{mse_loss.1} parent=1 // pred_check_branch
      %79 = sbr.rel (%p77) target = $region13
    $region12: #{mse_loss.1} parent=1 // pred_region
      %80 = vst [vmem:[#allocation2] sm:$0xff] 0.0
      %81 = vst [vmem:[#allocation2 + $0x8] sm:$0xff] 0.0
    $region13: #{mse_loss.1} parent=1 // pred_fallthru
      _
    %v82 = vld [vmem:[%s59] sm:$0xff]
    %v83 = vld [vmem:[%s59 + $0x8] sm:$0xff]
    %v84 = vld [vmem:[%s71] sm:$0xff]
    %v85 = vld [vmem:[%s71 + $0x8] sm:$0xff]
    %v86 = vsub.f32 %v82, %v84
    %v87 = vsub.f32 %v83, %v85
    %v88 = vmul.f32 %v86, %v86
    %v89 = vmul.f32 %v87, %v87
    %v90 = vld [vmem:[#allocation2] sm:$0xff]
    %v91 = vld [vmem:[#allocation2 + $0x8] sm:$0xff]
    %v92 = vadd.f32 %v90, %v88
    %v93 = vadd.f32 %v91, %v89
    %94 = vst [vmem:[#allocation2] sm:$0xff] %v92
    %95 = vst [vmem:[#allocation2 + $0x8] sm:$0xff] %v93
    // Predicated region
    $region14: #{mse_loss.1} parent=1 // pred_check
      %p96 = pneg %p76
    $region15: #{mse_loss.1} parent=1 // pred_check_branch
      %98 = sbr.rel (%p96) target = $region17
    $region16: #{mse_loss.1} parent=1 // pred_region
      %v99 = vld [vmem:[#allocation2] sm:$0xff]
      %v100 = vld [vmem:[#allocation2 + $0x8] sm:$0xff]
      %v101 = vadd.f32 %v99, %v100
      %v102 = vrot.slane %v101, 4
      %v103 = vadd.f32 %v101, %v102
      %v104 = vrot.slane %v103, 2
      %v105 = vadd.f32 %v103, %v104
      %v106 = vrot.slane %v105, 1
      %v107 = vadd.f32 %v105, %v106
      %108 = vadd.xlane.f32.xlu0 %v107
      %v109 = vpop.xlane.xlu0 %108
      %vm110 = vcmask 0
      %111 = vst.msk [vmem:[#allocation3] sm:$0x1] %vm110, %v109
    $region17: #{mse_loss.1} parent=1 // pred_fallthru
      _
    // Predicated region
    $region18: #{mse_loss.1} parent=1 // pred_check
      _
    $region19: #{mse_loss.1} parent=1 // pred_check_branch
      %113 = sbr.rel (0) target = $region21
    $region20: #{mse_loss.1} parent=1 // pred_region
      %115 = vsyncadd [#allocation4], 0
      %s117 = sshll.u32 [#allocation3], 4
      %s118 = int_to_ptr.vmem [resolvable:$true] %s117
      %s119 = sshll.u32 %s2, 4
      %s120 = int_to_ptr.hbm [resolvable:$true] %s119
      %122 = dma.vmem_to_hbm [thread:$0]  %s118, 16, %s120, [#allocation4]
    $region21: #{mse_loss.1} parent=1 // pred_fallthru
      _
    // Predicated region
    $region22: #{mse_loss.1} parent=1 // pred_check
      _
    $region23: #{mse_loss.1} parent=1 // pred_check_branch
      %124 = sbr.rel (0) target = $region25
    $region24: #{mse_loss.1} parent=1 // pred_region
      %126 = dma.done [#allocation4], 16
    $region25: #{mse_loss.1} parent=1 // pred_fallthru
      _
    %127 = vsyncpa [#allocation4], 1

</llo_original>
